<compile_context>
chip_gen: v6e
topology: v6e:2x2x1
jax: 0.10.0
libtpu: 0.0.40
codegen_flags: <defaults>
</compile_context>

<pallas_src>
import jax
import jax.numpy as jnp
from jax import lax
from jax.experimental import pallas as pl
from jax.experimental.pallas import tpu as pltpu


# ---------------------------------------------------------------------------
# Planning helpers
# ---------------------------------------------------------------------------
def _vmem_capacity_bytes():
    """Per-core VMEM capacity; conservative (v7x) fallback if unqueryable."""
    try:
        info = pltpu.get_tpu_info()
        for name in ("vmem_capacity_bytes", "vmem_size_bytes", "vmem_bytes"):
            cap = getattr(info, name, None)
            if cap:
                return int(cap)
    except Exception:
        pass
    return 64 * 1024 * 1024


def _choose_block(n, candidates):
    """Largest candidate that evenly divides n, else the full extent."""
    for c in candidates:
        if n >= c and n % c == 0:
            return c
    return n


def _choose_batch_tile(B, candidates):
    """Prefer a tile yielding >= 2 batch tiles (keeps both v7x TCs busy)."""
    for c in candidates:
        if B % c == 0 and B // c >= 2:
            return c
    for c in candidates:
        if B % c == 0:
            return c
    return B


def _const_spec(block_shape, index_map):
    """BlockSpec for constant-index blocks: single-buffered if supported."""
    try:
        return pl.BlockSpec(block_shape, index_map,
                            pipeline_mode=pl.Buffered(1))
    except Exception:
        return pl.BlockSpec(block_shape, index_map)


# ---------------------------------------------------------------------------
# Kernel
# ---------------------------------------------------------------------------
def _make_kernel(tb, nk):
    """Fused (linear · Wo, L2-normalize, cos-sim, per-row CE) kernel."""

    def _epilogue(lin_f32, wo_ref, tgt_ref, scores_ref, rowloss_ref, i):
        # embeddings_output = linear(premise) * Wo[op]   (f32 tail)
        out = lin_f32 * wo_ref[...].astype(jnp.float32)              # [tb, D]
        inv_o = lax.rsqrt(jnp.maximum(
            jnp.sum(out * out, axis=-1, keepdims=True), 1e-24))
        out_n = out * inv_o                                          # [tb, D]

        # util.cos_sim: out_n · tgt_nᵀ on the MXU (bf16 in, f32 out).
        # tgt_ref already holds L2-normalized (target + ov) in bf16.
        scores = lax.dot_general(
            out_n.astype(jnp.bfloat16), tgt_ref[...],
            dimension_numbers=(((1,), (1,)), ((), ())),
            preferred_element_type=jnp.float32)                      # [tb, B]
        scores_ref[...] = scores

        # Matching-pair similarity = scores[r, i*tb + r], extracted with an
        # iota mask so the loss is exactly CrossEntropy(scores, arange(B)).
        bfull = scores.shape[1]
        col = lax.broadcasted_iota(jnp.int32, (tb, bfull), 1)
        row = lax.broadcasted_iota(jnp.int32, (tb, bfull), 0) + i * tb
        diag = jnp.sum(jnp.where(col == row, scores, 0.0),
                       axis=-1, keepdims=True)                       # [tb, 1]

        # Per-row CE:  logsumexp(scores_row) - scores[row, row]
        m = jnp.max(scores, axis=-1, keepdims=True)
        lse = m + jnp.log(jnp.sum(jnp.exp(scores - m), axis=-1,
                                  keepdims=True))
        rowloss_ref[...] = jnp.broadcast_to(lse - diag, (tb, 128))

    if nk == 1:
        # Whole [D, D] weight resident — single grid axis over batch tiles.
        def kernel(prem_ref, w_ref, b_ref, wo_ref, tgt_ref,
                   scores_ref, rowloss_ref):
            lin = jnp.dot(prem_ref[...], w_ref[...],
                          preferred_element_type=jnp.float32)        # [tb, D]
            _epilogue(lin + b_ref[...], wo_ref, tgt_ref,
                      scores_ref, rowloss_ref, pl.program_id(0))
        return kernel

    def kernel(prem_ref, w_ref, b_ref, wo_ref, tgt_ref,
               scores_ref, rowloss_ref, acc_ref):
        k = pl.program_id(1)
        partial = jnp.dot(prem_ref[...], w_ref[...],
                          preferred_element_type=jnp.float32)        # [tb, D]

        @pl.when(k == 0)
        def _():
            acc_ref[...] = partial          # first step: write, no zero-init

        @pl.when(k > 0)
        def _():
            acc_ref[...] += partial

        @pl.when(k == pl.num_programs(1) - 1)
        def _():
            _epilogue(acc_ref[...] + b_ref[...], wo_ref, tgt_ref,
                      scores_ref, rowloss_ref, pl.program_id(0))
    return kernel


# ---------------------------------------------------------------------------
# Wrapper — mirrors TransLatentReasoning.forward with loss_type='mnr'
# ---------------------------------------------------------------------------
def trans_latent_reasoning_forward(prem_emb, tgt_emb, W, b, Wo_gathered,
                                   ov_gathered):
    """Returns (loss, scores, labels) as in the reference forward()."""
    B, D = prem_emb.shape

    cap = _vmem_capacity_bytes()
    vmem_limit = max(32 * 1024 * 1024, int(cap * 0.8))

    # Batch tile: bigger candidates on 128-MiB-VMEM parts, but always prefer
    # nb >= 2 so v7x's two TensorCores both get work.
    tb_candidates = (512, 256, 128) if cap >= 100 * 1024 * 1024 else (256, 128)
    tb = _choose_batch_tile(B, tb_candidates)
    nb = B // tb

    # Resident-footprint estimate with the whole [D, D] weight kept in VMEM.
    resident = (D * D * 2            # W  (bf16, constant index)
                + B * D * 2          # tgt_n (bf16, constant index)
                + 2 * tb * D * 2     # premise tile (double-buffered bf16)
                + 2 * tb * D * 4     # Wo tile (double-buffered f32)
                + 2 * tb * B * 4     # scores output tile
                + 2 * tb * 128 * 4   # rowloss output tile
                + 2 * D * 4)         # bias
    if resident <= int(vmem_limit * 0.7):
        tk = D                        # weight DMA'd once, no K axis
    else:
        tk = _choose_block(D, (1024, 512, 256, 128))
    nk = D // tk

    # bf16 MXU operands; bias / Wo stay f32 (f32 tail).
    prem = prem_emb.astype(jnp.bfloat16)
    w_t = W.T.astype(jnp.bfloat16)                      # [D_in, D_out]
    bias = b.reshape(1, D).astype(jnp.float32)
    wo = Wo_gathered.astype(jnp.float32)

    # embeddings_target = target + ov(op), L2-normalized — hoisted, f32 math.
    tgt_all = tgt_emb.astype(jnp.float32) + ov_gathered.astype(jnp.float32)
    inv_t = lax.rsqrt(jnp.maximum(
        jnp.sum(tgt_all * tgt_all, axis=-1, keepdims=True), 1e-24))
    tgt_n = (tgt_all * inv_t).astype(jnp.bfloat16)      # [B, D]

    if nk == 1:
        grid = (nb,)
        dims = ("parallel",)
        in_specs = [
            pl.BlockSpec((tb, D), lambda i: (i, 0)),        # premise
            _const_spec((D, D), lambda i: (0, 0)),          # Wᵀ (resident)
            _const_spec((1, D), lambda i: (0, 0)),          # bias
            pl.BlockSpec((tb, D), lambda i: (i, 0)),        # Wo[op]
            _const_spec((B, D), lambda i: (0, 0)),          # normalized target
        ]
        out_specs = [
            pl.BlockSpec((tb, B), lambda i: (i, 0)),        # cosine scores
            pl.BlockSpec((tb, 128), lambda i: (i, 0)),      # per-row CE loss
        ]
        scratch_shapes = []
    else:
        grid = (nb, nk)
        dims = ("parallel", "arbitrary")
        in_specs = [
            pl.BlockSpec((tb, tk), lambda i, k: (i, k)),    # premise
            pl.BlockSpec((tk, D), lambda i, k: (k, 0)),     # Wᵀ (K-streamed)
            _const_spec((1, D), lambda i, k: (0, 0)),       # bias
            pl.BlockSpec((tb, D), lambda i, k: (i, 0)),     # Wo[op]
            _const_spec((B, D), lambda i, k: (0, 0)),       # normalized target
        ]
        out_specs = [
            pl.BlockSpec((tb, B), lambda i, k: (i, 0)),
            pl.BlockSpec((tb, 128), lambda i, k: (i, 0)),
        ]
        scratch_shapes = [pltpu.VMEM((tb, D), jnp.float32)]

    scores, rowloss = pl.pallas_call(
        _make_kernel(tb, nk),
        grid=grid,
        in_specs=in_specs,
        out_specs=out_specs,
        out_shape=[
            jax.ShapeDtypeStruct((B, B), jnp.float32),
            jax.ShapeDtypeStruct((B, 128), jnp.float32),
        ],
        scratch_shapes=scratch_shapes,
        compiler_params=pltpu.CompilerParams(
            dimension_semantics=dims,
            vmem_limit_bytes=vmem_limit),
    )(prem, w_t, bias, wo, tgt_n)

    loss = jnp.mean(rowloss[:, 0])           # mean of (lse - diag) over rows
    labels = jnp.arange(B, dtype=jnp.int32)
    return loss, scores, labels


def simple_encoder(token_emb, input_ids, attention_mask):
    # TODO(synk): TransformerModel/RNNModel/CNNModel/GNNModel encoders are not
    # defined in the reference source; use a deterministic mean-pooled
    # token-embedding stand-in producing [B, D] sentence embeddings.
    emb = token_emb[input_ids]                                 # [B, S, D]
    mask = attention_mask[..., None].astype(jnp.float32)       # [B, S, 1]
    return jnp.sum(emb * mask, axis=1) / jnp.maximum(jnp.sum(mask, axis=1), 1.0)


if __name__ == "__main__":
    key = jax.random.PRNGKey(0)
    n_tokens, n_operations = 50, 6
    B, S, D = 4, 8, 32          # batch, seq length, encoder hidden (self.dim)

    ks = jax.random.split(key, 9)
    # Deterministic parameter init (shapes from __init__)
    token_emb = jax.random.normal(ks[0], (n_tokens, D), jnp.float32) * 0.1
    W = jax.random.normal(ks[1], (D, D), jnp.float32) / jnp.sqrt(D)      # nn.Linear(dim, dim)
    b = jax.random.normal(ks[2], (D,), jnp.float32) * 0.01
    ov_table = jax.random.normal(ks[3], (n_operations, D), jnp.float32)  # torch.randn init
    Wo_table = jax.random.uniform(ks[4], (n_operations, D), jnp.float32,
                                  minval=-1.0, maxval=1.0)               # np.random.uniform(-1,1)

    # Inputs
    prem_ids = jax.random.randint(ks[5], (B, S), 0, n_tokens, dtype=jnp.int32)
    tgt_ids = jax.random.randint(ks[6], (B, S), 0, n_tokens, dtype=jnp.int32)
    operation = jax.random.randint(ks[7], (B,), 0, n_operations, dtype=jnp.int32)
    attn_mask = jnp.ones((B, S), dtype=jnp.int32)

    premise = {"input_ids": prem_ids, "attention_mask": attn_mask}
    target_expression = {"input_ids": tgt_ids, "attention_mask": attn_mask}

    # Encoder + embedding-table gathers (glue in plain JAX)
    embeddings_premise = simple_encoder(token_emb, premise["input_ids"],
                                        premise["attention_mask"])
    embeddings_target = simple_encoder(token_emb, target_expression["input_ids"],
                                       target_expression["attention_mask"])
    Wo_g = Wo_table[operation]      # Wo[operation]
    ov_g = ov_table[operation]      # self.ov(operation)

    loss, scores, labels = trans_latent_reasoning_forward(
        embeddings_premise, embeddings_target, W, b, Wo_g, ov_g)

    jax.block_until_ready((loss, scores, labels))
    print("KERNEL_OK")
</pallas_src>

<mosaic_0001>
module attributes {stable_mosaic.version = 11 : i64} {
  func.func @kernel(%arg0: i32, %arg1: memref<4x32xbf16, #tpu.memory_space<vmem>>, %arg2: memref<32x32xbf16, #tpu.memory_space<vmem>>, %arg3: memref<1x32xf32, #tpu.memory_space<vmem>>, %arg4: memref<4x32xf32, #tpu.memory_space<vmem>>, %arg5: memref<4x32xbf16, #tpu.memory_space<vmem>>, %arg6: memref<4x4xf32, #tpu.memory_space<vmem>>, %arg7: memref<4x128xf32, #tpu.memory_space<vmem>>) attributes {dimension_semantics = [#tpu.dimension_semantics<parallel>], iteration_bounds = array<i64: 1>, scalar_prefetch = 0 : i64, scratch_operands = 0 : i64, tpu.core_type = #tpu.core_type<tc>, window_params = [{transform_indices = @transform_0, window_bounds = array<i64: 4, 32>}, {pipeline_mode = #tpu.pipeline_mode<synchronous>, transform_indices = @transform_1, window_bounds = array<i64: 32, 32>}, {pipeline_mode = #tpu.pipeline_mode<synchronous>, transform_indices = @transform_2, window_bounds = array<i64: 1, 32>}, {transform_indices = @transform_3, window_bounds = array<i64: 4, 32>}, {pipeline_mode = #tpu.pipeline_mode<synchronous>, transform_indices = @transform_4, window_bounds = array<i64: 4, 32>}, {transform_indices = @transform_5, window_bounds = array<i64: 4, 4>}, {transform_indices = @transform_6, window_bounds = array<i64: 4, 128>}]} {
    %c0 = arith.constant 0 : index
    %c0_0 = arith.constant 0 : index
    %0 = vector.load %arg1[%c0, %c0_0] : memref<4x32xbf16, #tpu.memory_space<vmem>>, vector<4x32xbf16>
    %c0_1 = arith.constant 0 : index
    %c0_2 = arith.constant 0 : index
    %1 = vector.load %arg2[%c0_1, %c0_2] : memref<32x32xbf16, #tpu.memory_space<vmem>>, vector<32x32xbf16>
    %cst = arith.constant dense<0.000000e+00> : vector<4x32xf32>
    %2 = tpu.matmul %0, %1, %cst {dimension_numbers = #tpu.dot_dimension_numbers<[1], [0], [0], [1], [0, 0, 1, 1], [], []>} : vector<4x32xbf16>, vector<32x32xbf16>, vector<4x32xf32> -> vector<4x32xf32>
    %c0_3 = arith.constant 0 : index
    %c0_4 = arith.constant 0 : index
    %3 = vector.load %arg3[%c0_3, %c0_4] : memref<1x32xf32, #tpu.memory_space<vmem>>, vector<1x32xf32>
    %4 = vector.broadcast %3 : vector<1x32xf32> to vector<4x32xf32>
    %5 = arith.addf %2, %4 : vector<4x32xf32>
    %c0_5 = arith.constant 0 : index
    %c0_6 = arith.constant 0 : index
    %6 = vector.load %arg4[%c0_5, %c0_6] : memref<4x32xf32, #tpu.memory_space<vmem>>, vector<4x32xf32>
    %7 = arith.mulf %5, %6 : vector<4x32xf32>
    %8 = arith.mulf %7, %7 : vector<4x32xf32>
    %cst_7 = arith.constant dense<0.000000e+00> : vector<4xf32>
    %9 = vector.multi_reduction <add>, %8, %cst_7 [1] : vector<4x32xf32> to vector<4xf32>
    %10 = vector.shape_cast %9 : vector<4xf32> to vector<4x1xf32>
    %cst_8 = arith.constant 1.000000e-24 : f32
    %11 = vector.broadcast %cst_8 : f32 to vector<4x1xf32>
    %12 = arith.maximumf %10, %11 : vector<4x1xf32>
    %13 = math.rsqrt %12 : vector<4x1xf32>
    %14 = vector.broadcast %13 : vector<4x1xf32> to vector<4x32xf32>
    %15 = arith.mulf %7, %14 : vector<4x32xf32>
    %16 = arith.truncf %15 : vector<4x32xf32> to vector<4x32xbf16>
    %c0_9 = arith.constant 0 : index
    %c0_10 = arith.constant 0 : index
    %17 = vector.load %arg5[%c0_9, %c0_10] : memref<4x32xbf16, #tpu.memory_space<vmem>>, vector<4x32xbf16>
    %cst_11 = arith.constant dense<0.000000e+00> : vector<4x4xf32>
    %18 = tpu.matmul %16, %17, %cst_11 {dimension_numbers = #tpu.dot_dimension_numbers<[1], [1], [0], [0], [0, 0, 1, 0], [], []>} : vector<4x32xbf16>, vector<4x32xbf16>, vector<4x4xf32> -> vector<4x4xf32>
    %c0_12 = arith.constant 0 : index
    %c0_13 = arith.constant 0 : index
    %19 = vector.load %arg6[%c0_12, %c0_13] : memref<4x4xf32, #tpu.memory_space<vmem>>, vector<4x4xf32>
    tpu.vector_store %arg6[%c0_12, %c0_13], %18 {strides = array<i32>} : memref<4x4xf32, #tpu.memory_space<vmem>>, vector<4x4xf32>,
    %20 = tpu.iota {dimensions = array<i32: 1>} : vector<4x4xi32>
    %21 = tpu.iota {dimensions = array<i32: 0>} : vector<4x4xi32>
    %c4_i32 = arith.constant 4 : i32
    %22 = arith.muli %arg0, %c4_i32 : i32
    %23 = vector.broadcast %22 : i32 to vector<4x4xi32>
    %24 = arith.addi %21, %23 : vector<4x4xi32>
    %25 = arith.cmpi eq, %20, %24 : vector<4x4xi32>
    %cst_14 = arith.constant 0.000000e+00 : f32
    %26 = vector.broadcast %cst_14 : f32 to vector<4x4xf32>
    %27 = arith.select %25, %18, %26 : vector<4x4xi1>, vector<4x4xf32>
    %cst_15 = arith.constant dense<0.000000e+00> : vector<4xf32>
    %28 = vector.multi_reduction <add>, %27, %cst_15 [1] : vector<4x4xf32> to vector<4xf32>
    %29 = vector.shape_cast %28 : vector<4xf32> to vector<4x1xf32>
    %cst_16 = arith.constant dense<0xFF800000> : vector<4xf32>
    %30 = vector.multi_reduction <maximumf>, %18, %cst_16 [1] : vector<4x4xf32> to vector<4xf32>
    %31 = vector.shape_cast %30 : vector<4xf32> to vector<4x1xf32>
    %32 = vector.broadcast %31 : vector<4x1xf32> to vector<4x4xf32>
    %33 = arith.subf %18, %32 : vector<4x4xf32>
    %34 = math.exp %33 : vector<4x4xf32>
    %cst_17 = arith.constant dense<0.000000e+00> : vector<4xf32>
    %35 = vector.multi_reduction <add>, %34, %cst_17 [1] : vector<4x4xf32> to vector<4xf32>
    %36 = vector.shape_cast %35 : vector<4xf32> to vector<4x1xf32>
    %37 = math.log %36 : vector<4x1xf32>
    %38 = arith.addf %31, %37 : vector<4x1xf32>
    %39 = arith.subf %38, %29 : vector<4x1xf32>
    %40 = vector.shape_cast %39 : vector<4x1xf32> to vector<4x1xf32>
    %41 = vector.broadcast %40 : vector<4x1xf32> to vector<4x128xf32>
    %c0_18 = arith.constant 0 : index
    %c0_19 = arith.constant 0 : index
    %42 = vector.load %arg7[%c0_18, %c0_19] : memref<4x128xf32, #tpu.memory_space<vmem>>, vector<4x128xf32>
    tpu.vector_store %arg7[%c0_18, %c0_19], %41 {strides = array<i32>} : memref<4x128xf32, #tpu.memory_space<vmem>>, vector<4x128xf32>,
    return
  }
  func.func @transform_0(%arg0: i32) -> (i32, i32) {
    %c0_i32 = arith.constant 0 : i32
    %c0_i32_0 = arith.constant 0 : i32
    return %arg0, %c0_i32 : i32, i32
  }
  func.func @transform_1(%arg0: i32) -> (i32, i32) {
    %c0_i32 = arith.constant 0 : i32
    %c0_i32_0 = arith.constant 0 : i32
    %c0_i32_1 = arith.constant 0 : i32
    return %c0_i32, %c0_i32_0 : i32, i32
  }
  func.func @transform_2(%arg0: i32) -> (i32, i32) {
    %c0_i32 = arith.constant 0 : i32
    %c0_i32_0 = arith.constant 0 : i32
    %c0_i32_1 = arith.constant 0 : i32
    return %c0_i32, %c0_i32_0 : i32, i32
  }
  func.func @transform_3(%arg0: i32) -> (i32, i32) {
    %c0_i32 = arith.constant 0 : i32
    %c0_i32_0 = arith.constant 0 : i32
    return %arg0, %c0_i32 : i32, i32
  }
  func.func @transform_4(%arg0: i32) -> (i32, i32) {
    %c0_i32 = arith.constant 0 : i32
    %c0_i32_0 = arith.constant 0 : i32
    %c0_i32_1 = arith.constant 0 : i32
    return %c0_i32, %c0_i32_0 : i32, i32
  }
  func.func @transform_5(%arg0: i32) -> (i32, i32) {
    %c0_i32 = arith.constant 0 : i32
    %c0_i32_0 = arith.constant 0 : i32
    return %arg0, %c0_i32 : i32, i32
  }
  func.func @transform_6(%arg0: i32) -> (i32, i32) {
    %c0_i32 = arith.constant 0 : i32
    %c0_i32_0 = arith.constant 0 : i32
    return %arg0, %c0_i32 : i32, i32
  }
}

</mosaic_0001>

<llo_original>
// kernel: tpu_custom_call.1
$region0: #{tpu_custom_call.1}
  #allocation0 [shape = 'u32[]', space=smem, size = 0x4, offset = 0x4, fixed_abs, tag = 'smem constant byte address 0x4 - core index']
  #allocation1 [shape = 'u32[144,128]{1,0:T(1,128)}', space=vmem, size = 0x12000, scoped, tag = 'internal scratch']
  %s0 = inlined_call_operand.hbm [shape: bf16[4,32], index: 0, kind: input, shape index: {}]
  %s1 = inlined_call_operand.hbm [shape: bf16[32,32], index: 1, kind: input, shape index: {}]
  %s2 = inlined_call_operand.vmem [shape: f32[1,32], index: 2, kind: input, shape index: {}]
  %s3 = inlined_call_operand.vmem [shape: f32[4,32], index: 3, kind: input, shape index: {}]
  %s4 = inlined_call_operand.vmem [shape: bf16[4,32], index: 4, kind: input, shape index: {}]
  %s5 = inlined_call_operand.hbm [shape: f32[4,4], index: 5, kind: output, shape index: {0}]
  %s6 = inlined_call_operand.hbm [shape: f32[4,128], index: 6, kind: output, shape index: {1}]
  %7 = xla_tuple %s5, %s6
  %s8 = sld [smem:[#allocation0]]
  $region46: #{tpu_custom_call.1} parent=0
    _
  %s10 = ssub.s32 1, %s8
  %s11 = scalar_select 0, %s10, %s8
  $region1: #{tpu_custom_call.1} parent=0
    #allocation2 [shape = 'u8[1024]{0}', space=vmem, size = 0x400, scoped, tag = 'input window, operand 0, single buffered']
    #allocation3 [shape = 's32[1]{0}', space=sflag, size = 0x4, scoped, tag = 'scoped memory for tpu_custom_call.1']
    #allocation4 [shape = 's32[1]{0}', space=sflag, size = 0x4, scoped, tag = 'scoped memory for tpu_custom_call.1']
    #allocation5 [shape = 'u8[8192]{0}', space=vmem, size = 0x2000, scoped, tag = 'input window, operand 1, single buffered']
    #allocation6 [shape = 's32[1]{0}', space=sflag, size = 0x4, scoped, tag = 'scoped memory for tpu_custom_call.1']
    #allocation7 [shape = 'u8[2048]{0}', space=vmem, size = 0x800, scoped, tag = 'output window, operand 0, single buffered']
    #allocation8 [shape = 'u8[2048]{0}', space=vmem, size = 0x800, scoped, tag = 'output window, operand 1, single buffered']
    #allocation9 [shape = 's32[1]{0}', space=sflag, size = 0x4, scoped, tag = 'scoped memory for tpu_custom_call.1']
    %12 = vsyncpa [#allocation3], 0
    %13 = vsyncpa [#allocation6], 0
    %14 = vsyncpa [#allocation4], 0
    %15 = vsyncpa [#allocation9], 0
    // Predicated region
    $region2: #{tpu_custom_call.1} parent=1 // pred_check
      _
    $region3: #{tpu_custom_call.1} parent=1 // pred_check_branch
      %17 = sbr.rel (0) target = $region5
    $region4: #{tpu_custom_call.1} parent=1 // pred_region
      %s19 = ssub.s32 32, 32
      %20 = vsyncadd [#allocation3], %s19
      %s22 = sshll.u32 [#allocation2], 4
      %s23 = int_to_ptr.vmem [resolvable:$true] %s22
      %25 = dma.hbm_to_vmem [thread:$0]  %s0, 32, %s23, [#allocation3]
    $region5: #{tpu_custom_call.1} parent=1 // pred_fallthru
      _
    // Predicated region
    $region6: #{tpu_custom_call.1} parent=1 // pred_check
      _
    $region7: #{tpu_custom_call.1} parent=1 // pred_check_branch
      %27 = sbr.rel (0) target = $region9
    $region8: #{tpu_custom_call.1} parent=1 // pred_region
      %s29 = ssub.s32 256, 256
      %30 = vsyncadd [#allocation6], %s29
      %s31 = sshll.u32 [#allocation5], 4
      %s32 = int_to_ptr.vmem [resolvable:$true] %s31
      %37 = dma.hbm_to_vmem [thread:$0]  %s1, 256, %s32, [#allocation6], 64, 64, 4
    $region9: #{tpu_custom_call.1} parent=1 // pred_fallthru
      _
    // Predicated region
    $region10: #{tpu_custom_call.1} parent=1 // pred_check
      _
    $region11: #{tpu_custom_call.1} parent=1 // pred_check_branch
      %39 = sbr.rel (0) target = $region13
    $region12: #{tpu_custom_call.1} parent=1 // pred_region
      _
    $region13: #{tpu_custom_call.1} parent=1 // pred_fallthru
      _
    // Predicated region
    $region14: #{tpu_custom_call.1} parent=1 // pred_check
      _
    $region15: #{tpu_custom_call.1} parent=1 // pred_check_branch
      %41 = sbr.rel (0) target = $region17
    $region16: #{tpu_custom_call.1} parent=1 // pred_region
      _
    $region17: #{tpu_custom_call.1} parent=1 // pred_fallthru
      _
    // Predicated region
    $region18: #{tpu_custom_call.1} parent=1 // pred_check
      _
    $region19: #{tpu_custom_call.1} parent=1 // pred_check_branch
      %43 = sbr.rel (0) target = $region21
    $region20: #{tpu_custom_call.1} parent=1 // pred_region
      _
    $region21: #{tpu_custom_call.1} parent=1 // pred_fallthru
      _
    // Predicated region
    $region22: #{tpu_custom_call.1} parent=1 // pred_check
      _
    $region23: #{tpu_custom_call.1} parent=1 // pred_check_branch
      %45 = sbr.rel (0) target = $region25
    $region24: #{tpu_custom_call.1} parent=1 // pred_region
      %46 = dma.done [#allocation3], 32
    $region25: #{tpu_custom_call.1} parent=1 // pred_fallthru
      _
    // Predicated region
    $region26: #{tpu_custom_call.1} parent=1 // pred_check
      _
    $region27: #{tpu_custom_call.1} parent=1 // pred_check_branch
      %48 = sbr.rel (0) target = $region29
    $region28: #{tpu_custom_call.1} parent=1 // pred_region
      %49 = dma.done [#allocation6], 256
    $region29: #{tpu_custom_call.1} parent=1 // pred_fallthru
      _
    %v51 = vld [vmem:[#allocation2] sm:$0x3]
    %v52 = vld [vmem:[#allocation5] sm:$0xf]
    %v53 = vld [vmem:[#allocation5 + $0x4] sm:$0xf]
    %v54 = vld [vmem:[#allocation5 + $0x8] sm:$0xf]
    %v55 = vld [vmem:[#allocation5 + $0xc] sm:$0xf]
    %v56 = vld [vmem:[%s2] sm:$0x1]
    %v58 = vlaneseq
    %v59 = vshrl.u32 %v58, 7
    %v60 = vsub.s32 0, %v59
    %v61 = vrot.slane %v56, %v60
    %v67 = vunpack.c.l.b16 %v52
    %v68 = vunpack.c.l.b16 %v53
    %v69 = vunpack.c.l.b16 %v54
    %v70 = vunpack.c.l.b16 %v55
    %v71 = vpack.c.b16 %v68, %v67
    %v72 = vpack.c.b16 %v70, %v69
    %vm75 = vcmask 261120
    %v77 = vsel %vm75, %v51, 0
    %79 = vmatprep.subr.bf16.mxu0 0
    %80 = vmatpush1.bf16.msra.mxu0 0
    %81 = vmatprep.subr.bf16.mxu0 0
    %82 = vmatpush1.bf16.msra.mxu0 0
    %83 = vmatprep.subr.bf16.mxu0 0
    %84 = vmatpush1.bf16.msra.mxu0 0
    %85 = vmatprep.subr.bf16.mxu0 0
    %86 = vmatpush1.bf16.msra.mxu0 0
    %87 = vmatprep.subr.bf16.mxu0 0
    %88 = vmatpush1.bf16.msra.mxu0 0
    %89 = vmatprep.subr.bf16.mxu0 0
    %90 = vmatpush1.bf16.msra.mxu0 0
    %91 = vmatprep.subr.bf16.mxu0 0
    %92 = vmatpush1.bf16.msra.mxu0 %v72
    %93 = vmatprep.subr.bf16.mxu0 0
    %94 = vmatpush1.bf16.msra.mxu0 %v71
    %95 = vmatprep.subr.bf16.mxu0 0
    %96 = vmatpush2.bf16.msra.mxu0 0
    %97 = vmatprep.subr.bf16.mxu0 0
    %98 = vmatpush2.bf16.msra.mxu0 0
    %99 = vmatprep.subr.bf16.mxu0 0
    %100 = vmatpush2.bf16.msra.mxu0 0
    %101 = vmatprep.subr.bf16.mxu0 0
    %102 = vmatpush2.bf16.msra.mxu0 0
    %103 = vmatprep.subr.bf16.mxu0 0
    %104 = vmatpush2.bf16.msra.mxu0 0
    %105 = vmatprep.subr.bf16.mxu0 0
    %106 = vmatpush2.bf16.msra.mxu0 0
    %107 = vmatprep.subr.bf16.mxu0 0
    %108 = vmatpush2.bf16.msra.mxu0 0
    %109 = vmatprep.subr.bf16.mxu0 0
    %110 = vmatpush2.bf16.msra.mxu0 0
    %111 = vmatprep.mubr.bf16.mxu0 0
    %112 = vmatmul.mubr.bf16.gmra.mxu0 %v77
    %v113 = vpop.f32.mrf.mxu0
    %v114 = vadd.f32 %v61, %v113
    %v115 = vpop.f32.mrf.mxu0
    %v116 = vpop.f32.mrf.mxu0
    %v117 = vpop.f32.mrf.mxu0
    %118 = vdwg.mxu0
    %v119 = vld [vmem:[%s3] sm:$0xf]
    %v120 = vmul.f32 %v114, %v119
    %v121 = vmul.f32 %v120, %v120
    %vm122 = vcmask 257024
    %v123 = vsel %vm122, %v121, 0.0
    %124 = vadd.xlane.f32.xlu0 %v123
    %v125 = vpop.xlane.xlu0 %124
    %v126 = vmax.f32 %v125, 1e-24
    %v127 = vrsqrt.pop %v126
    %v128 = vmul.f32 %v120, %v127
    %v129 = vpack.c.bf16 %v128, %v128
    %v130 = vld [vmem:[%s4] sm:$0x3]
    %v132 = vsel %vm75, %v129, 0
    %v135 = vsel %vm75, %v130, 0
    %137 = vmatprep.subr.bf16.mxu0 0
    %138 = vmatpush1.bf16.xpose.msra.mxu0 0
    %139 = vmatprep.subr.bf16.mxu0 0
    %140 = vmatpush1.bf16.xpose.msra.mxu0 0
    %141 = vmatprep.subr.bf16.mxu0 0
    %142 = vmatpush1.bf16.xpose.msra.mxu0 0
    %143 = vmatprep.subr.bf16.mxu0 0
    %144 = vmatpush1.bf16.xpose.msra.mxu0 0
    %145 = vmatprep.subr.bf16.mxu0 0
    %146 = vmatpush1.bf16.xpose.msra.mxu0 0
    %147 = vmatprep.subr.bf16.mxu0 0
    %148 = vmatpush1.bf16.xpose.msra.mxu0 0
    %149 = vmatprep.subr.bf16.mxu0 0
    %150 = vmatpush1.bf16.xpose.msra.mxu0 0
    %151 = vmatprep.subr.bf16.mxu0 0
    %152 = vmatpush1.bf16.xpose.msra.mxu0 %v135
    %153 = vmatprep.subr.bf16.mxu0 0
    %154 = vmatpush2.bf16.xpose.msra.mxu0 0
    %155 = vmatprep.subr.bf16.mxu0 0
    %156 = vmatpush2.bf16.xpose.msra.mxu0 0
    %157 = vmatprep.subr.bf16.mxu0 0
    %158 = vmatpush2.bf16.xpose.msra.mxu0 0
    %159 = vmatprep.subr.bf16.mxu0 0
    %160 = vmatpush2.bf16.xpose.msra.mxu0 0
    %161 = vmatprep.subr.bf16.mxu0 0
    %162 = vmatpush2.bf16.xpose.msra.mxu0 0
    %163 = vmatprep.subr.bf16.mxu0 0
    %164 = vmatpush2.bf16.xpose.msra.mxu0 0
    %165 = vmatprep.subr.bf16.mxu0 0
    %166 = vmatpush2.bf16.xpose.msra.mxu0 0
    %167 = vmatprep.subr.bf16.mxu0 0
    %168 = vmatpush2.bf16.xpose.msra.mxu0 0
    %169 = vmatprep.mubr.bf16.mxu0 0
    %170 = vmatmul.mubr.bf16.gmra.mxu0 %v132
    %v171 = vpop.f32.mrf.mxu0
    %v172 = vadd.f32 0.0, %v171
    %v173 = vpop.f32.mrf.mxu0
    %v174 = vpop.f32.mrf.mxu0
    %v175 = vpop.f32.mrf.mxu0
    %176 = vdwg.mxu0
    %vm177 = vcmask 27648
    %178 = vst.msk [vmem:[#allocation7] sm:$0xf] %vm177, %v172
    %v179 = vlaneseq
    %v180 = vand.u32 %v179, 127
    %v181 = vlaneseq
    %v182 = vshrl.u32 %v181, 7
    %s183 = smul.u32 0, 4
    %v184 = vstv %s183
    %v185 = vadd.s32 %v182, %v184
    %vm186 = vcmp.eq.s32.totalorder %v180, %v185
    %v187 = vsel %vm186, %v172, 0.0
    %v188 = vsel %vm177, %v187, 0.0
    %189 = vadd.xlane.f32.xlu0 %v188
    %v190 = vpop.xlane.xlu0 %189
    %v191 = vsel %vm177, %v172, -inf
    %192 = vmax.xlane.f32.xlu0 %v191
    %v193 = vpop.xlane.xlu0 %192
    %v194 = vsub.f32 %v172, %v193
    %v195 = vmul.f32 %v194, 1.442695
    %v196 = vpow.pop %v195
    %v197 = vsel %vm177, %v196, 0.0
    %198 = vadd.xlane.f32.xlu0 %v197
    %v199 = vpop.xlane.xlu0 %198
    %v200 = vlog2.pop %v199
    %v201 = vmul.f32 %v200, 0.6931472
    %v202 = vadd.f32 %v193, %v201
    %v203 = vsub.f32 %v202, %v190
    %204 = vst [vmem:[#allocation8] sm:$0xf] %v203
    // Predicated region
    $region30: #{tpu_custom_call.1} parent=1 // pred_check
      _
    $region31: #{tpu_custom_call.1} parent=1 // pred_check_branch
      %206 = sbr.rel (0) target = $region33
    $region32: #{tpu_custom_call.1} parent=1 // pred_region
      %s208 = ssub.s32 64, 64
      %209 = vsyncadd [#allocation4], %s208
      %s211 = sshll.u32 [#allocation7], 4
      %s212 = int_to_ptr.vmem [resolvable:$true] %s211
      %214 = dma.vmem_to_hbm [thread:$0]  %s212, 64, %s5, [#allocation4]
    $region33: #{tpu_custom_call.1} parent=1 // pred_fallthru
      _
    // Predicated region
    $region34: #{tpu_custom_call.1} parent=1 // pred_check
      _
    $region35: #{tpu_custom_call.1} parent=1 // pred_check_branch
      %216 = sbr.rel (0) target = $region37
    $region36: #{tpu_custom_call.1} parent=1 // pred_region
      %s218 = ssub.s32 64, 64
      %219 = vsyncadd [#allocation9], %s218
      %s221 = sshll.u32 [#allocation8], 4
      %s222 = int_to_ptr.vmem [resolvable:$true] %s221
      %224 = dma.vmem_to_hbm [thread:$0]  %s222, 64, %s6, [#allocation9]
    $region37: #{tpu_custom_call.1} parent=1 // pred_fallthru
      _
    // Predicated region
    $region38: #{tpu_custom_call.1} parent=1 // pred_check
      _
    $region39: #{tpu_custom_call.1} parent=1 // pred_check_branch
      %226 = sbr.rel (0) target = $region41
    $region40: #{tpu_custom_call.1} parent=1 // pred_region
      %227 = dma.done [#allocation4], 64
    $region41: #{tpu_custom_call.1} parent=1 // pred_fallthru
      _
    // Predicated region
    $region42: #{tpu_custom_call.1} parent=1 // pred_check
      _
    $region43: #{tpu_custom_call.1} parent=1 // pred_check_branch
      %229 = sbr.rel (0) target = $region45
    $region44: #{tpu_custom_call.1} parent=1 // pred_region
      %230 = dma.done [#allocation9], 64
    $region45: #{tpu_custom_call.1} parent=1 // pred_fallthru
      _
    %231 = vsyncpa [#allocation3], 1
    %232 = vsyncpa [#allocation6], 1
    %233 = vsyncpa [#allocation4], 1
    %234 = vsyncpa [#allocation9], 1

</llo_original>
